<compile_context>
chip_gen: v6e
topology: v6e:2x2x1
jax: 0.10.0
libtpu: 0.0.40
codegen_flags: <defaults>
</compile_context>

<pallas_src>
import functools

import jax
import jax.numpy as jnp
from jax.experimental import pallas as pl
from jax.experimental.pallas import tpu as pltpu


# --------------------------------------------------------------------------
# Generation-aware tuning for the FC (weight-streaming-bound) layers.
# --------------------------------------------------------------------------
def _fc_tuning():
    try:
        vmem_bytes = pltpu.get_tpu_info().vmem_capacity_bytes
    except Exception:
        vmem_bytes = 64 * 1024 * 1024           # conservative (v7x-like) default
    if vmem_bytes >= 128 * 1024 * 1024:
        # v5e / v6e: 128 MiB VMEM, one TensorCore -> big tiles, deeper pipeline.
        return dict(
            tk_cand=(4096, 3584, 2048, 1792, 1024, 512, 256, 128),
            tn_cand=(4096, 2048, 1024, 512, 256, 128),
            vmem_limit=96 * 1024 * 1024,
            wbuf=3)
    # v7x: 64 MiB VMEM, 2 TensorCores -> keep >=2 parallel output blocks so
    # both cores stream half the weight matrix; stay well inside VMEM.
    return dict(
        tk_cand=(2048, 1792, 1024, 512, 256, 128),
        tn_cand=(2048, 1024, 512, 256, 128),
        vmem_limit=48 * 1024 * 1024,
        wbuf=2)


_FC_TUNING = _fc_tuning()


# --------------------------------------------------------------------------
# Fused Conv3x3(pad=1) + bias + ReLU + MaxPool2x2.
# Patches are pre-im2col'ed pooling-quadrant-major: x is (N, 4, Ho*Wo, 9*Cin),
# weight is (9*Cin, C_out).  Grid = (N, C_out // tc).
# --------------------------------------------------------------------------
def conv_pool_kernel(x_ref, w_ref, b_ref, o_ref):
    w = w_ref[...]
    a00 = jnp.dot(x_ref[0], w, preferred_element_type=jnp.float32)
    a01 = jnp.dot(x_ref[1], w, preferred_element_type=jnp.float32)
    a10 = jnp.dot(x_ref[2], w, preferred_element_type=jnp.float32)
    a11 = jnp.dot(x_ref[3], w, preferred_element_type=jnp.float32)
    # 2x2/stride-2 max-pool == elementwise max over the four quadrants; bias is
    # per-channel and ReLU is monotone, so pool/bias/ReLU commute.
    y = jnp.maximum(jnp.maximum(a00, a01), jnp.maximum(a10, a11))
    y = jnp.maximum(y + b_ref[...], 0.0)
    o_ref[...] = y.astype(o_ref.dtype)


def im2col_3x3_pool(x_nhwc):
    """(N,H,W,C) -> (N, 4, (H//2)*(W//2), 9*C), quadrant-major row order."""
    N, H, W, C = x_nhwc.shape
    Ho, Wo = H // 2, W // 2
    xp = jnp.pad(x_nhwc, ((0, 0), (1, 1), (1, 1), (0, 0)))    # padding=1
    cols = [xp[:, dy:dy + H, dx:dx + W, :] for dy in range(3) for dx in range(3)]
    p = jnp.concatenate(cols, axis=-1)                         # (N, H, W, 9C)
    p = p.reshape(N, Ho, 2, Wo, 2, 9 * C).transpose(0, 2, 4, 1, 3, 5)
    return p.reshape(N, 4, Ho * Wo, 9 * C)                     # rows: (ho, wo)


def conv3x3_relu_pool(patches, w27, b, *, tc=256):
    # tc=256 fills the 256-wide MXU on v6e/v7x; on v5e it simply runs two
    # 128-wide passes (conv is <5% of runtime either way).
    N, Q, HWo, K9 = patches.shape
    C_out = w27.shape[1]
    return pl.pallas_call(
        conv_pool_kernel,
        out_shape=jax.ShapeDtypeStruct((N, HWo, C_out), jnp.bfloat16),
        grid=(N, C_out // tc),
        in_specs=[
            pl.BlockSpec((None, Q, HWo, K9), lambda n, c: (n, 0, 0, 0)),
            pl.BlockSpec((K9, tc), lambda n, c: (0, c)),
            pl.BlockSpec((1, tc), lambda n, c: (0, c)),
        ],
        out_specs=pl.BlockSpec((None, HWo, tc), lambda n, c: (n, 0, c)),
        compiler_params=pltpu.CompilerParams(
            dimension_semantics=("parallel", "parallel")),
    )(patches, w27, b)


# --------------------------------------------------------------------------
# Linear: y = (x @ (W_q * s)) + b  with int8 W_q, per-output-channel scale s.
# The scale is applied in the epilogue (exact, since s is per column).
# bf16 activations, int8->bf16 weight widening in-kernel, f32 accumulation.
# --------------------------------------------------------------------------
def linear_kernel(x_ref, w_ref, s_ref, b_ref, o_ref, acc_ref, *, relu):
    k = pl.program_id(1)

    @pl.when(k == 0)
    def _():
        acc_ref[...] = jnp.zeros_like(acc_ref)

    # int8 weight tile -> bf16 (VPU, hidden under the next tile's DMA),
    # bf16 x bf16 MXU matmul, f32 accumulation in VMEM.
    acc_ref[...] += jnp.dot(x_ref[...], w_ref[...].astype(jnp.bfloat16),
                            preferred_element_type=jnp.float32)

    @pl.when(k == pl.num_programs(1) - 1)
    def _():
        y = acc_ref[...] * s_ref[...] + b_ref[...]      # fused dequant + bias
        if relu:
            y = jnp.maximum(y, 0.0)
        o_ref[...] = y.astype(o_ref.dtype)


def _weight_spec(tk, tn, nbuf):
    idx = lambda j, k: (k, j)
    if nbuf > 2:
        try:
            return pl.BlockSpec((tk, tn), idx, pipeline_mode=pl.Buffered(nbuf))
        except TypeError:          # older pallas without pipeline_mode kwarg
            pass
    return pl.BlockSpec((tk, tn), idx)


def linear(x, w_q, scale, b, *, relu=False, out_dtype=jnp.bfloat16):
    M, K = x.shape
    Nf = w_q.shape[1]
    cfg = _FC_TUNING
    tk = next((t for t in cfg["tk_cand"] if K % t == 0), K)
    tn = next((t for t in cfg["tn_cand"] if Nf % t == 0), Nf)
    ksteps = K // tk
    nbuf = cfg["wbuf"] if ksteps >= cfg["wbuf"] else 2
    return pl.pallas_call(
        functools.partial(linear_kernel, relu=relu),
        out_shape=jax.ShapeDtypeStruct((M, Nf), out_dtype),
        grid=(Nf // tn, ksteps),
        in_specs=[
            pl.BlockSpec((M, tk), lambda j, k: (0, k)),
            _weight_spec(tk, tn, nbuf),
            pl.BlockSpec((1, tn), lambda j, k: (0, j)),
            pl.BlockSpec((1, tn), lambda j, k: (0, j)),
        ],
        out_specs=pl.BlockSpec((M, tn), lambda j, k: (0, j)),
        scratch_shapes=[pltpu.VMEM((M, tn), jnp.float32)],
        compiler_params=pltpu.CompilerParams(
            dimension_semantics=("parallel", "arbitrary"),
            vmem_limit_bytes=cfg["vmem_limit"]),
    )(x, w_q, scale, b)


# --------------------------------------------------------------------------
# Parameter init (deterministic xavier-uniform weights, zero biases), with
# kernel-friendly layouts:
#  * conv_w -> (27, 512) for the single K=27 matmul.
#  * fc1_w rows permuted from PyTorch's (c,h,w)-flatten order to (h,w,c).
#  * fc weights quantized to int8 + per-output-channel f32 scale.
#  * fc3 padded to a lane-dense 1024 columns (sliced back in the wrapper).
# --------------------------------------------------------------------------
def xavier_uniform(key, shape, fan_in, fan_out):
    limit = (6.0 / (fan_in + fan_out)) ** 0.5
    return jax.random.uniform(key, shape, jnp.float32, -limit, limit)


def quantize_int8_cols(w):
    """Per-output-channel symmetric int8 quantization: w ~= w_q * scale."""
    amax = jnp.max(jnp.abs(w), axis=0, keepdims=True)
    scale = jnp.maximum(amax, 1e-8) / 127.0
    w_q = jnp.clip(jnp.round(w / scale), -127.0, 127.0).astype(jnp.int8)
    return w_q, scale.astype(jnp.float32)


def init_params(key, in_channels=3, num_classes=1000):
    ks = jax.random.split(key, 4)
    c_out = 512

    conv_w = xavier_uniform(ks[0], (3, 3, in_channels, c_out),
                            9 * in_channels, 9 * c_out)
    conv_w = conv_w.reshape(9 * in_channels, c_out)            # (27, 512)

    # fc1: PyTorch row order is (c, h, w); permute rows to (h, w, c) so the
    # NHWC-flattened activation hits the same weights without a transpose.
    fc1_w = xavier_uniform(ks[1], (c_out * 7 * 7, 4096), c_out * 7 * 7, 4096)
    fc1_w = (fc1_w.reshape(c_out, 7, 7, 4096)
                  .transpose(1, 2, 0, 3)
                  .reshape(c_out * 7 * 7, 4096))

    fc2_w = xavier_uniform(ks[2], (4096, 4096), 4096, 4096)

    nc_pad = ((num_classes + 127) // 128) * 128                # 1000 -> 1024
    fc3_w = xavier_uniform(ks[3], (4096, num_classes), 4096, num_classes)
    fc3_w = jnp.pad(fc3_w, ((0, 0), (0, nc_pad - num_classes)))

    fc1_q, fc1_s = quantize_int8_cols(fc1_w)
    fc2_q, fc2_s = quantize_int8_cols(fc2_w)
    fc3_q, fc3_s = quantize_int8_cols(fc3_w)

    return {
        "conv_w": conv_w,
        "conv_b": jnp.zeros((1, c_out), jnp.float32),
        "fc1_w": fc1_q, "fc1_s": fc1_s, "fc1_b": jnp.zeros((1, 4096), jnp.float32),
        "fc2_w": fc2_q, "fc2_s": fc2_s, "fc2_b": jnp.zeros((1, 4096), jnp.float32),
        "fc3_w": fc3_q, "fc3_s": fc3_s, "fc3_b": jnp.zeros((1, nc_pad), jnp.float32),
    }


# --------------------------------------------------------------------------
# Full forward: features -> flatten -> classifier.
# --------------------------------------------------------------------------
def vgg_forward(params, x_nchw, num_classes=1000):
    # features: Conv3x3(pad=1) + ReLU + MaxPool2x2, fused into one kernel.
    x = jnp.transpose(x_nchw, (0, 2, 3, 1))                    # NCHW -> NHWC once
    N = x.shape[0]
    patches = im2col_3x3_pool(x)                               # (N, 4, 49, 27)
    x = conv3x3_relu_pool(patches, params["conv_w"], params["conv_b"])
    # (N, 49, 512) bf16, lane-dense; flatten is (h, w, c) row order, matching
    # the fc1 weight-row permutation done at init (== PyTorch's NCHW flatten).
    x = x.reshape(N, -1)                                       # (N, 512*7*7)

    # classifier (int8 weights, bf16 activations, f32 accumulation)
    x = linear(x, params["fc1_w"], params["fc1_s"], params["fc1_b"],
               relu=True, out_dtype=jnp.bfloat16)
    # TODO(synk): nn.Dropout(p=0.5) implemented as identity (eval-mode semantics).
    x = linear(x, params["fc2_w"], params["fc2_s"], params["fc2_b"],
               relu=True, out_dtype=jnp.bfloat16)
    # TODO(synk): nn.Dropout(p=0.5) implemented as identity (eval-mode semantics).
    x = linear(x, params["fc3_w"], params["fc3_s"], params["fc3_b"],
               relu=False, out_dtype=jnp.float32)
    return x[:, :num_classes]                                  # drop lane padding


if __name__ == "__main__":
    key = jax.random.PRNGKey(0)
    k_x, k_p = jax.random.split(key)

    num_classes = 1000
    params = init_params(k_p, in_channels=3, num_classes=num_classes)
    # smallest NCHW input whose features stage yields the (N, 7, 7, 512) the
    # classifier expects: one Conv3x3(pad=1)+ReLU+MaxPool2 block on 14x14.
    x = jax.random.normal(k_x, (2, 3, 14, 14), dtype=jnp.float32)

    out = vgg_forward(params, x, num_classes=num_classes)
    out = jax.block_until_ready(out)
    assert out.shape == (2, num_classes), out.shape
    assert bool(jnp.all(jnp.isfinite(out)))
    print("KERNEL_OK")
</pallas_src>

<mosaic_0001>
module attributes {stable_mosaic.version = 11 : i64} {
  func.func @conv_pool_kernel(%arg0: i32, %arg1: i32, %arg2: memref<1x4x49x27xf32, #tpu.memory_space<vmem>>, %arg3: memref<27x256xf32, #tpu.memory_space<vmem>>, %arg4: memref<1x256xf32, #tpu.memory_space<vmem>>, %arg5: memref<1x49x256xbf16, #tpu.memory_space<vmem>>) attributes {dimension_semantics = [#tpu.dimension_semantics<parallel>, #tpu.dimension_semantics<parallel>], iteration_bounds = array<i64: 2, 2>, scalar_prefetch = 0 : i64, scratch_operands = 0 : i64, tpu.core_type = #tpu.core_type<tc>, window_params = [{transform_indices = @transform_0, window_bounds = array<i64: 1, 4, 49, 27>}, {transform_indices = @transform_1, window_bounds = array<i64: 27, 256>}, {transform_indices = @transform_2, window_bounds = array<i64: 1, 256>}, {transform_indices = @transform_3, window_bounds = array<i64: 1, 49, 256>}]} {
    %c0 = arith.constant 0 : index
    %c0_0 = arith.constant 0 : index
    %0 = vector.load %arg3[%c0, %c0_0] : memref<27x256xf32, #tpu.memory_space<vmem>>, vector<27x256xf32>
    %c0_1 = arith.constant 0 : index
    %c0_2 = arith.constant 0 : index
    %c0_3 = arith.constant 0 : index
    %c0_4 = arith.constant 0 : index
    %1 = vector.load %arg2[%c0_1, %c0_2, %c0_3, %c0_4] : memref<1x4x49x27xf32, #tpu.memory_space<vmem>>, vector<1x1x49x27xf32>
    %2 = vector.shape_cast %1 : vector<1x1x49x27xf32> to vector<49x27xf32>
    %cst = arith.constant dense<0.000000e+00> : vector<49x256xf32>
    %3 = tpu.matmul %2, %0, %cst {dimension_numbers = #tpu.dot_dimension_numbers<[1], [0], [0], [1], [0, 0, 1, 1], [], []>} : vector<49x27xf32>, vector<27x256xf32>, vector<49x256xf32> -> vector<49x256xf32>
    %c0_5 = arith.constant 0 : index
    %c1 = arith.constant 1 : index
    %c0_6 = arith.constant 0 : index
    %c0_7 = arith.constant 0 : index
    %4 = vector.load %arg2[%c0_5, %c1, %c0_6, %c0_7] : memref<1x4x49x27xf32, #tpu.memory_space<vmem>>, vector<1x1x49x27xf32>
    %5 = vector.shape_cast %4 : vector<1x1x49x27xf32> to vector<49x27xf32>
    %cst_8 = arith.constant dense<0.000000e+00> : vector<49x256xf32>
    %6 = tpu.matmul %5, %0, %cst_8 {dimension_numbers = #tpu.dot_dimension_numbers<[1], [0], [0], [1], [0, 0, 1, 1], [], []>} : vector<49x27xf32>, vector<27x256xf32>, vector<49x256xf32> -> vector<49x256xf32>
    %c0_9 = arith.constant 0 : index
    %c2 = arith.constant 2 : index
    %c0_10 = arith.constant 0 : index
    %c0_11 = arith.constant 0 : index
    %7 = vector.load %arg2[%c0_9, %c2, %c0_10, %c0_11] : memref<1x4x49x27xf32, #tpu.memory_space<vmem>>, vector<1x1x49x27xf32>
    %8 = vector.shape_cast %7 : vector<1x1x49x27xf32> to vector<49x27xf32>
    %cst_12 = arith.constant dense<0.000000e+00> : vector<49x256xf32>
    %9 = tpu.matmul %8, %0, %cst_12 {dimension_numbers = #tpu.dot_dimension_numbers<[1], [0], [0], [1], [0, 0, 1, 1], [], []>} : vector<49x27xf32>, vector<27x256xf32>, vector<49x256xf32> -> vector<49x256xf32>
    %c0_13 = arith.constant 0 : index
    %c3 = arith.constant 3 : index
    %c0_14 = arith.constant 0 : index
    %c0_15 = arith.constant 0 : index
    %10 = vector.load %arg2[%c0_13, %c3, %c0_14, %c0_15] : memref<1x4x49x27xf32, #tpu.memory_space<vmem>>, vector<1x1x49x27xf32>
    %11 = vector.shape_cast %10 : vector<1x1x49x27xf32> to vector<49x27xf32>
    %cst_16 = arith.constant dense<0.000000e+00> : vector<49x256xf32>
    %12 = tpu.matmul %11, %0, %cst_16 {dimension_numbers = #tpu.dot_dimension_numbers<[1], [0], [0], [1], [0, 0, 1, 1], [], []>} : vector<49x27xf32>, vector<27x256xf32>, vector<49x256xf32> -> vector<49x256xf32>
    %13 = arith.maximumf %3, %6 : vector<49x256xf32>
    %14 = arith.maximumf %9, %12 : vector<49x256xf32>
    %15 = arith.maximumf %13, %14 : vector<49x256xf32>
    %c0_17 = arith.constant 0 : index
    %c0_18 = arith.constant 0 : index
    %16 = vector.load %arg4[%c0_17, %c0_18] : memref<1x256xf32, #tpu.memory_space<vmem>>, vector<1x256xf32>
    %17 = vector.broadcast %16 : vector<1x256xf32> to vector<49x256xf32>
    %18 = arith.addf %15, %17 : vector<49x256xf32>
    %cst_19 = arith.constant 0.000000e+00 : f32
    %19 = vector.broadcast %cst_19 : f32 to vector<49x256xf32>
    %20 = arith.maximumf %18, %19 : vector<49x256xf32>
    %21 = arith.truncf %20 : vector<49x256xf32> to vector<49x256xbf16>
    %c0_20 = arith.constant 0 : index
    %c0_21 = arith.constant 0 : index
    %c0_22 = arith.constant 0 : index
    %22 = vector.load %arg5[%c0_20, %c0_21, %c0_22] : memref<1x49x256xbf16, #tpu.memory_space<vmem>>, vector<1x49x256xbf16>
    %23 = vector.shape_cast %22 : vector<1x49x256xbf16> to vector<49x256xbf16>
    %24 = vector.shape_cast %21 : vector<49x256xbf16> to vector<1x49x256xbf16>
    tpu.vector_store %arg5[%c0_20, %c0_21, %c0_22], %24 {strides = array<i32>} : memref<1x49x256xbf16, #tpu.memory_space<vmem>>, vector<1x49x256xbf16>,
    return
  }
  func.func @transform_0(%arg0: i32, %arg1: i32) -> (i32, i32, i32, i32) {
    %c0_i32 = arith.constant 0 : i32
    %c0_i32_0 = arith.constant 0 : i32
    %c0_i32_1 = arith.constant 0 : i32
    %c0_i32_2 = arith.constant 0 : i32
    return %arg0, %c0_i32, %c0_i32_0, %c0_i32_1 : i32, i32, i32, i32
  }
  func.func @transform_1(%arg0: i32, %arg1: i32) -> (i32, i32) {
    %c0_i32 = arith.constant 0 : i32
    %c0_i32_0 = arith.constant 0 : i32
    return %c0_i32, %arg1 : i32, i32
  }
  func.func @transform_2(%arg0: i32, %arg1: i32) -> (i32, i32) {
    %c0_i32 = arith.constant 0 : i32
    %c0_i32_0 = arith.constant 0 : i32
    return %c0_i32, %arg1 : i32, i32
  }
  func.func @transform_3(%arg0: i32, %arg1: i32) -> (i32, i32, i32) {
    %c0_i32 = arith.constant 0 : i32
    %c0_i32_0 = arith.constant 0 : i32
    return %arg0, %c0_i32, %arg1 : i32, i32, i32
  }
}

</mosaic_0001>

<llo_original>
// kernel: tpu_custom_call.1
$region0: #{tpu_custom_call.1}
  #allocation0 [shape = 'u32[]', space=smem, size = 0x4, offset = 0x4, fixed_abs, tag = 'smem constant byte address 0x4 - core index']
  #allocation1 [shape = 'u32[144,128]{1,0:T(1,128)}', space=vmem, size = 0x12000, scoped, tag = 'internal scratch']
  %s0 = inlined_call_operand.vmem [shape: f32[2,4,49,27], index: 0, kind: input, shape index: {}]
  %s1 = inlined_call_operand.vmem [shape: f32[27,512], index: 1, kind: input, shape index: {}]
  %s2 = inlined_call_operand.vmem [shape: f32[1,512], index: 2, kind: input, shape index: {}]
  %s3 = inlined_call_operand.vmem [shape: bf16[2,49,512], index: 3, kind: output, shape index: {}]
  %s4 = sld [smem:[#allocation0]]
  $region102: #{tpu_custom_call.1} parent=0
    _
  %s6 = ssub.s32 1, %s4
  %s7 = scalar_select 0, %s6, %s4
  $region1: #{tpu_custom_call.1} parent=0
    #allocation2 [shape = 'u8[65536]{0}', space=vmem, size = 0x10000, scoped, tag = 'input window, operand 1']
    #allocation3 [shape = 'u8[57344]{0}', space=vmem, size = 0xe000, scoped, tag = 'output window, operand 0']
    loop: start=0, step=1, limit=6
    $region2: #{tpu_custom_call.1} parent=1 // loop_pre_header
      _
    $region3: #{tpu_custom_call.1} parent=1 // loop_header
      %s9 = sphi 0, %s13
      %p10 = scmp.ge.s32.totalorder %s9, 6
      %s16 = sphi 0, %s28
      %s17 = sphi 0, %s24
      %s18 = sphi 0, %s16
      %s19 = sphi 0, %s17
      %s20 = sphi 0, %s18
      %s21 = sphi 0, %s19
      %s31 = sphi 0, %s33
      %s34 = sphi 0, %s31
      %s35 = sphi 0, %s34
      %s51 = sphi 0, %s35
      %s57 = sphi 0, %s59
      %s60 = sphi 0, %s57
      %s61 = sphi 0, %s60
      %s77 = sphi 0, %s61
      %s83 = sphi 0, %s85
      %s86 = sphi 0, %s83
      %s87 = sphi 0, %s86
      %s103 = sphi 0, %s87
      %s111 = sphi 0, %s113
      %s114 = sphi 0, %s111
      %s115 = sphi 0, %s114
      %s131 = sphi 0, %s115
    $region4: #{tpu_custom_call.1} parent=1 // loop_header_branch
      %12 = sbr.rel (%p10) target = $region8
    $region5: #{tpu_custom_call.1} parent=1 // loop_body
      %s14 = ssub.s32 %s9, 1
      %s15 = ssub.s32 %s9, 2
      %s22 = sadd.s32 1, %s17
      %p23 = scmp.ge.s32.totalorder %s22, 2
      %s24 = scalar_select %p23, 0, %s22
      %s25 = sadd.s32 1, %s16
      %s26 = scalar_select %p23, %s25, %s16
      %p27 = scmp.ge.s32.totalorder %s26, 2
      %s28 = scalar_select %p27, 0, %s26
      %s29 = ssub.s32 %s16, %s28
      %p30 = scmp.eq.s32.totalorder %s29, 0
      %s32 = sadd.s32 %s31, 1
      %s33 = scalar_select %p30, %s31, %s32
      %p36 = pneg %p30
      %p37 = scmp.eq.s32.totalorder %s9, 3
      %p38 = por %p36, %p37
      %p39 = scmp.ne.s32.totalorder %s31, %s34
      %p40 = scmp.eq.s32.totalorder %s9, 0
      %p41 = por %p39, %p40
      %p42 = scmp.ne.s32.totalorder %s31, %s34
      %p43 = scmp.eq.s32.totalorder %s14, 3
      %p44 = por %p42, %p43
      %p45 = scmp.ne.s32.totalorder %s34, %s35
      %p46 = scmp.eq.s32.totalorder %s14, 0
      %p47 = por %p45, %p46
      %p48 = scmp.ne.s32.totalorder %s34, %s35
      %p49 = scmp.eq.s32.totalorder %s15, 3
      %p50 = por %p48, %p49
      %p52 = scmp.ne.s32.totalorder %s35, %s51
      %p53 = scmp.eq.s32.totalorder %s15, 0
      %p54 = por %p52, %p53
      %s55 = ssub.s32 %s17, %s24
      %p56 = scmp.eq.s32.totalorder %s55, 0
      %s58 = sadd.s32 %s57, 1
      %s59 = scalar_select %p56, %s57, %s58
      %p62 = pneg %p56
      %p63 = scmp.eq.s32.totalorder %s9, 3
      %p64 = por %p62, %p63
      %p65 = scmp.ne.s32.totalorder %s57, %s60
      %p66 = scmp.eq.s32.totalorder %s9, 0
      %p67 = por %p65, %p66
      %p68 = scmp.ne.s32.totalorder %s57, %s60
      %p69 = scmp.eq.s32.totalorder %s14, 3
      %p70 = por %p68, %p69
      %p71 = scmp.ne.s32.totalorder %s60, %s61
      %p72 = scmp.eq.s32.totalorder %s14, 0
      %p73 = por %p71, %p72
      %p74 = scmp.ne.s32.totalorder %s60, %s61
      %p75 = scmp.eq.s32.totalorder %s15, 3
      %p76 = por %p74, %p75
      %p78 = scmp.ne.s32.totalorder %s61, %s77
      %p79 = scmp.eq.s32.totalorder %s15, 0
      %p80 = por %p78, %p79
      %s81 = ssub.s32 %s17, %s24
      %p82 = scmp.eq.s32.totalorder %s81, 0
      %s84 = sadd.s32 %s83, 1
      %s85 = scalar_select %p82, %s83, %s84
      %p88 = pneg %p82
      %p89 = scmp.eq.s32.totalorder %s9, 3
      %p90 = por %p88, %p89
      %p91 = scmp.ne.s32.totalorder %s83, %s86
      %p92 = scmp.eq.s32.totalorder %s9, 0
      %p93 = por %p91, %p92
      %p94 = scmp.ne.s32.totalorder %s83, %s86
      %p95 = scmp.eq.s32.totalorder %s14, 3
      %p96 = por %p94, %p95
      %p97 = scmp.ne.s32.totalorder %s86, %s87
      %p98 = scmp.eq.s32.totalorder %s14, 0
      %p99 = por %p97, %p98
      %p100 = scmp.ne.s32.totalorder %s86, %s87
      %p101 = scmp.eq.s32.totalorder %s15, 3
      %p102 = por %p100, %p101
      %p104 = scmp.ne.s32.totalorder %s87, %s103
      %p105 = scmp.eq.s32.totalorder %s15, 0
      %p106 = por %p104, %p105
      %s107 = ssub.s32 %s16, %s28
      %s108 = ssub.s32 %s17, %s24
      %s109 = sor.u32 %s107, %s108
      %p110 = scmp.eq.s32.totalorder %s109, 0
      %s112 = sadd.s32 %s111, 1
      %s113 = scalar_select %p110, %s111, %s112
      %p116 = pneg %p110
      %p117 = scmp.eq.s32.totalorder %s9, 3
      %p118 = por %p116, %p117
      %p119 = scmp.ne.s32.totalorder %s111, %s114
      %p120 = scmp.eq.s32.totalorder %s9, 0
      %p121 = por %p119, %p120
      %p122 = scmp.ne.s32.totalorder %s111, %s114
      %p123 = scmp.eq.s32.totalorder %s14, 3
      %p124 = por %p122, %p123
      %p125 = scmp.ne.s32.totalorder %s114, %s115
      %p126 = scmp.eq.s32.totalorder %s14, 0
      %p127 = por %p125, %p126
      %p128 = scmp.ne.s32.totalorder %s114, %s115
      %p129 = scmp.eq.s32.totalorder %s15, 3
      %p130 = por %p128, %p129
      %p132 = scmp.ne.s32.totalorder %s115, %s131
      %p133 = scmp.eq.s32.totalorder %s15, 0
      %p134 = por %p132, %p133
      %p135 = scmp.le.s32.totalorder 1, %s9
      %p136 = scmp.lt.s32.totalorder %s9, 5
      %p137 = pnand %p135, %p136
      %p138 = pneg %p137
      // Predicated region
      $region9: #{tpu_custom_call.1} parent=5 // pred_check
        _
      $region10: #{tpu_custom_call.1} parent=5 // pred_check_branch
        %140 = sbr.rel (%p137) target = $region12
      $region11: #{tpu_custom_call.1} parent=5 // pred_region
        %s141 = ssub.s32 %s9, 1
      $region12: #{tpu_custom_call.1} parent=5 // pred_fallthru
        _
      %p142 = scmp.lt.s32.totalorder %s9, 4
      // Predicated region
      $region13: #{tpu_custom_call.1} parent=5 // pred_check
        %p143 = pneg %p142
      $region14: #{tpu_custom_call.1} parent=5 // pred_check_branch
        %145 = sbr.rel (%p143) target = $region16
      $region15: #{tpu_custom_call.1} parent=5 // pred_region
        // Predicated region
        $region17: #{tpu_custom_call.1} parent=15 // pred_check
          %p146 = pneg %p41
        $region18: #{tpu_custom_call.1} parent=15 // pred_check_branch
          %148 = sbr.rel (%p146) target = $region20
        $region19: #{tpu_custom_call.1} parent=15 // pred_region
          %p149 = scmp.lt.s32.totalorder %s16, 1
          %s150 = scalar_select %p149, %s16, 1
          %s151 = smul.addr %s150, 28
          %s152 = smul.addr %s151, 8
          %s153 = scalar_lea.vmem %s0, %s152
        $region20: #{tpu_custom_call.1} parent=15 // pred_fallthru
          _
        // Predicated region
        $region21: #{tpu_custom_call.1} parent=15 // pred_check
          %p154 = pneg %p67
        $region22: #{tpu_custom_call.1} parent=15 // pred_check_branch
          %156 = sbr.rel (%p154) target = $region24
        $region23: #{tpu_custom_call.1} parent=15 // pred_region
          %s157 = sand.u32 %s57, 1
          %s158 = sand.u32 %s57, 1
          %s159 = smul.addr %s158, 64
          %s160 = scalar_lea.vmem [#allocation2], %s159
          %s161 = smul.u32 2, %s17
          %s162 = smul.addr %s161, 8
          %s163 = scalar_lea.vmem %s1, %s162
          // Predicated region
          $region25: #{tpu_custom_call.1} parent=23 // pred_check
            _
          $region26: #{tpu_custom_call.1} parent=23 // pred_check_branch
            %165 = sbr.rel (0) target = $region28
          $region27: #{tpu_custom_call.1} parent=23 // pred_region
            // Predicated region
            $region29: #{tpu_custom_call.1} parent=27 // pred_check
              _
            $region30: #{tpu_custom_call.1} parent=27 // pred_check_branch
              %167 = sbr.rel (0) target = $region32
            $region31: #{tpu_custom_call.1} parent=27 // pred_region
              loop: start=0, step=1, limit=1
              $region33: #{tpu_custom_call.1} parent=31 // loop_pre_header
                _
              $region34: #{tpu_custom_call.1} parent=31 // loop_header
                %s169 = sphi 0, %s173
                %p170 = scmp.ge.s32.totalorder %s169, 1
                %s174 = sphi %s163, %s163
                %s175 = sphi %s160, %s160
              $region35: #{tpu_custom_call.1} parent=31 // loop_header_branch
                %172 = sbr.rel (%p170) target = $region39
              $region36: #{tpu_custom_call.1} parent=31 // loop_body
                %v176 = vld [vmem:[%s174] sm:$0xff]
                %177 = vst [vmem:[%s175] sm:$0xff] %v176
                %v178 = vld [vmem:[%s174 + $0x8] sm:$0xff]
                %179 = vst [vmem:[%s175 + $0x8] sm:$0xff] %v178
                %v180 = vld [vmem:[%s174 + $0x20] sm:$0xff]
                %181 = vst [vmem:[%s175 + $0x10] sm:$0xff] %v180
                %v182 = vld [vmem:[%s174 + $0x28] sm:$0xff]
                %183 = vst [vmem:[%s175 + $0x18] sm:$0xff] %v182
                %v184 = vld [vmem:[%s174 + $0x40] sm:$0xff]
                %185 = vst [vmem:[%s175 + $0x20] sm:$0xff] %v184
                %v186 = vld [vmem:[%s174 + $0x48] sm:$0xff]
                %187 = vst [vmem:[%s175 + $0x28] sm:$0xff] %v186
                %v188 = vld [vmem:[%s174 + $0x60] sm:$0xff]
                %189 = vst [vmem:[%s175 + $0x30] sm:$0xff] %v188
                %v190 = vld [vmem:[%s174 + $0x68] sm:$0xff]
                %191 = vst [vmem:[%s175 + $0x38] sm:$0xff] %v190
              $region37: #{tpu_custom_call.1} parent=31 // loop_footer
                %s173 = sadd.s32 1, %s169
              $region38: #{tpu_custom_call.1} parent=31 // loop_footer_branch
                %168 = sbr.rel target = $region34
              $region39: #{tpu_custom_call.1} parent=31 // loop_exit
                _
            $region32: #{tpu_custom_call.1} parent=27 // pred_fallthru
              _
            // Predicated region
            $region40: #{tpu_custom_call.1} parent=27 // pred_check
              _
            $region41: #{tpu_custom_call.1} parent=27 // pred_check_branch
              %193 = sbr.rel target = $region43
            $region42: #{tpu_custom_call.1} parent=27 // pred_region
              _
            $region43: #{tpu_custom_call.1} parent=27 // pred_fallthru
              _
          $region28: #{tpu_custom_call.1} parent=23 // pred_fallthru
            _
          %194 = vnop
        $region24: #{tpu_custom_call.1} parent=15 // pred_fallthru
          _
        // Predicated region
        $region44: #{tpu_custom_call.1} parent=15 // pred_check
          %p195 = pneg %p93
        $region45: #{tpu_custom_call.1} parent=15 // pred_check_branch
          %197 = sbr.rel (%p195) target = $region47
        $region46: #{tpu_custom_call.1} parent=15 // pred_region
          %s198 = smul.u32 2, %s17
          %p199 = scmp.lt.s32.totalorder %s198, 3
          %s200 = scalar_select %p199, %s198, 3
          %s201 = scalar_lea.vmem %s2, %s200
          %s202 = smul.u32 2, %s17
        $region47: #{tpu_custom_call.1} parent=15 // pred_fallthru
          _
      $region16: #{tpu_custom_call.1} parent=5 // pred_fallthru
        _
      %p203 = scmp.le.s32.totalorder 1, %s9
      %p204 = scmp.lt.s32.totalorder %s9, 5
      %p205 = pnand %p203, %p204
      %p206 = pneg %p205
      // Predicated region
      $region48: #{tpu_custom_call.1} parent=5 // pred_check
        _
      $region49: #{tpu_custom_call.1} parent=5 // pred_check_branch
        %208 = sbr.rel (%p205) target = $region51
      $region50: #{tpu_custom_call.1} parent=5 // pred_region
        %s209 = ssub.s32 %s9, 1
        %s210 = sand.u32 %s60, 1
        %s211 = sand.u32 %s60, 1
        %s212 = smul.addr %s211, 64
        %s213 = scalar_lea.vmem [#allocation2], %s212
        // Predicated region
        $region52: #{tpu_custom_call.1} parent=50 // pred_check
          %p214 = pneg %p73
        $region53: #{tpu_custom_call.1} parent=50 // pred_check_branch
          %216 = sbr.rel (%p214) target = $region55
        $region54: #{tpu_custom_call.1} parent=50 // pred_region
          _
        $region55: #{tpu_custom_call.1} parent=50 // pred_fallthru
          _
        %p217 = scmp.lt.s32.totalorder %s18, 1
        %s218 = scalar_select %p217, %s18, 1
        %s219 = smul.addr %s218, 28
        %s220 = smul.addr %s219, 8
        %s221 = scalar_lea.vmem %s0, %s220
        %p222 = pneg %p47
        %p223 = pneg %p44
        %s224 = sand.u32 %s60, 1
        %s225 = sand.u32 %s60, 1
        %s226 = smul.addr %s225, 64
        %s227 = scalar_lea.vmem [#allocation2], %s226
        %p228 = pneg %p73
        %p229 = pneg %p70
        %s230 = smul.u32 2, %s19
        %p231 = scmp.lt.s32.totalorder %s230, 3
        %s232 = scalar_select %p231, %s230, 3
        %s233 = scalar_lea.vmem %s2, %s232
        %p234 = pneg %p99
        %p235 = pneg %p96
        %p236 = pneg %p127
        %p237 = pneg %p124
        %s238 = sand.u32 %s114, 1
        %s239 = sand.u32 %s114, 1
        %s240 = smul.addr %s239, 56
        %s241 = scalar_lea.vmem [#allocation3], %s240
        %p242 = scmp.lt.s32.totalorder %s18, 1
        %s243 = scalar_select %p242, %s18, 1
        %s244 = smul.addr %s243, 28
        %s245 = smul.addr %s244, 8
        %s246 = scalar_lea.vmem %s0, %s245
        %s247 = smul.u32 2, %s19
        %s248 = smul.u32 2, %s19
        %p249 = scmp.lt.s32.totalorder %s248, 3
        %s250 = scalar_select %p249, %s248, 3
        %s251 = scalar_lea.vmem %s2, %s250
        %s252 = smul.u32 2, %s19
        %s253 = smul.u32 2, %s19
        %v254 = vld [vmem:[%s213] sm:$0xff]
        %v255 = vld [vmem:[%s213 + $0x8] sm:$0xff]
        %v256 = vld [vmem:[%s213 + $0x10] sm:$0xff]
        %v257 = vld [vmem:[%s213 + $0x18] sm:$0xff]
        %v258 = vld [vmem:[%s213 + $0x20] sm:$0xff]
        %v259 = vld [vmem:[%s213 + $0x28] sm:$0xff]
        %v260 = vld [vmem:[%s213 + $0x30] sm:$0x7]
        %v261 = vld [vmem:[%s213 + $0x38] sm:$0x7]
        %v262 = vld [vmem:[%s246] sm:$0xff]
        %v263 = vld [vmem:[%s246 + $0x8] sm:$0xff]
        %v264 = vld [vmem:[%s246 + $0x10] sm:$0xff]
        %v265 = vld [vmem:[%s246 + $0x18] sm:$0xff]
        %v266 = vld [vmem:[%s246 + $0x20] sm:$0xff]
        %v267 = vld [vmem:[%s246 + $0x28] sm:$0xff]
        %v268 = vld [vmem:[%s246 + $0x30] sm:$0x1]
        %vm269 = vcmask 220160
        %v271 = vsel %vm269, %v262, 0
        %v274 = vsel %vm269, %v263, 0
        %v277 = vsel %vm269, %v264, 0
        %v280 = vsel %vm269, %v265, 0
        %v283 = vsel %vm269, %v266, 0
        %v286 = vsel %vm269, %v267, 0
        %v289 = vsel %vm269, %v268, 0
        %vm291 = vcmask 1042432
        %v293 = vsel %vm291, %v260, 0
        %v296 = vsel %vm291, %v261, 0
        %298 = vmatprep.subr.mxu0 0.0
        %299 = vmatpush1.msra.mxu0 0.0
        %300 = vmatprep.subr.mxu0 0.0
        %301 = vmatpush1.msra.mxu0 0.0
        %302 = vmatprep.subr.mxu0 0.0
        %303 = vmatpush1.msra.mxu0 0.0
        %304 = vmatprep.subr.mxu0 0.0
        %305 = vmatpush1.msra.mxu0 0.0
        %306 = vmatprep.subr.mxu0 0.0
        %307 = vmatpush1.msra.mxu0 0.0
        %308 = vmatprep.subr.mxu0 0.0
        %309 = vmatpush1.msra.mxu0 0.0
        %310 = vmatprep.subr.mxu0 0.0
        %311 = vmatpush1.msra.mxu0 0.0
        %312 = vmatprep.subr.mxu0 0.0
        %313 = vmatpush1.msra.mxu0 0.0
        %314 = vmatprep.subr.mxu0 0.0
        %315 = vmatpush1.msra.mxu0 0.0
        %316 = vmatprep.subr.mxu0 0.0
        %317 = vmatpush1.msra.mxu0 0.0
        %318 = vmatprep.subr.mxu0 0.0
        %319 = vmatpush1.msra.mxu0 0.0
        %320 = vmatprep.subr.mxu0 0.0
        %321 = vmatpush1.msra.mxu0 0.0
        %322 = vmatprep.subr.mxu0 %v296
        %323 = vmatpush1.msra.mxu0 %v293
        %324 = vmatprep.subr.mxu0 %v259
        %325 = vmatpush1.msra.mxu0 %v258
        %326 = vmatprep.subr.mxu0 %v257
        %327 = vmatpush1.msra.mxu0 %v256
        %328 = vmatprep.subr.mxu0 %v255
        %329 = vmatpush1.msra.mxu0 %v254
        %330 = vmatprep.subr.mxu0 0.0
        %331 = vmatpush2.msra.mxu0 0.0
        %332 = vmatprep.subr.mxu0 0.0
        %333 = vmatpush2.msra.mxu0 0.0
        %334 = vmatprep.subr.mxu0 0.0
        %335 = vmatpush2.msra.mxu0 0.0
        %336 = vmatprep.subr.mxu0 0.0
        %337 = vmatpush2.msra.mxu0 0.0
        %338 = vmatprep.subr.mxu0 0.0
        %339 = vmatpush2.msra.mxu0 0.0
        %340 = vmatprep.subr.mxu0 0.0
        %341 = vmatpush2.msra.mxu0 0.0
        %342 = vmatprep.subr.mxu0 0.0
        %343 = vmatpush2.msra.mxu0 0.0
        %344 = vmatprep.subr.mxu0 0.0
        %345 = vmatpush2.msra.mxu0 0.0
        %346 = vmatprep.subr.mxu0 0.0
        %347 = vmatpush2.msra.mxu0 0.0
        %348 = vmatprep.subr.mxu0 0.0
        %349 = vmatpush2.msra.mxu0 0.0
        %350 = vmatprep.subr.mxu0 0.0
        %351 = vmatpush2.msra.mxu0 0.0
        %352 = vmatprep.subr.mxu0 0.0
        %353 = vmatpush2.msra.mxu0 0.0
        %354 = vmatprep.subr.mxu0 0.0
        %355 = vmatpush2.msra.mxu0 0.0
        %356 = vmatprep.subr.mxu0 0.0
        %357 = vmatpush2.msra.mxu0 0.0
        %358 = vmatprep.subr.mxu0 0.0
        %359 = vmatpush2.msra.mxu0 0.0
        %360 = vmatprep.subr.mxu0 0.0
        %361 = vmatpush2.msra.mxu0 0.0
        %362 = vmatprep.mubr.f32.mxu0 0.0
        %363 = vmatmul.mubr.f32.gmra.mxu0 %v271
        %v364 = vpop.f32.mrf.mxu0
        %v365 = vadd.f32 0.0, %v364
        %v366 = vpop.f32.mrf.mxu0
        %v367 = vadd.f32 0.0, %v366
        %368 = vmatprep.mubr.f32.mxu0 0.0
        %369 = vmatmul.mubr.f32.gmra.mxu0 %v274
        %v370 = vpop.f32.mrf.mxu0
        %v371 = vadd.f32 0.0, %v370
        %v372 = vpop.f32.mrf.mxu0
        %v373 = vadd.f32 0.0, %v372
        %374 = vmatprep.mubr.f32.mxu0 0.0
        %375 = vmatmul.mubr.f32.gmra.mxu0 %v277
        %v376 = vpop.f32.mrf.mxu0
        %v377 = vadd.f32 0.0, %v376
        %v378 = vpop.f32.mrf.mxu0
        %v379 = vadd.f32 0.0, %v378
        %380 = vmatprep.mubr.f32.mxu0 0.0
        %381 = vmatmul.mubr.f32.gmra.mxu0 %v280
        %v382 = vpop.f32.mrf.mxu0
        %v383 = vadd.f32 0.0, %v382
        %v384 = vpop.f32.mrf.mxu0
        %v385 = vadd.f32 0.0, %v384
        %386 = vmatprep.mubr.f32.mxu0 0.0
        %387 = vmatmul.mubr.f32.gmra.mxu0 %v283
        %v388 = vpop.f32.mrf.mxu0
        %v389 = vadd.f32 0.0, %v388
        %v390 = vpop.f32.mrf.mxu0
        %v391 = vadd.f32 0.0, %v390
        %392 = vmatprep.mubr.f32.mxu0 0.0
        %393 = vmatmul.mubr.f32.gmra.mxu0 %v286
        %v394 = vpop.f32.mrf.mxu0
        %v395 = vadd.f32 0.0, %v394
        %v396 = vpop.f32.mrf.mxu0
        %v397 = vadd.f32 0.0, %v396
        %398 = vmatprep.mubr.f32.mxu0 0.0
        %399 = vmatmul.mubr.f32.gmra.mxu0 %v289
        %v400 = vpop.f32.mrf.mxu0
        %v401 = vadd.f32 0.0, %v400
        %v402 = vpop.f32.mrf.mxu0
        %v403 = vadd.f32 0.0, %v402
        %404 = vdwg.mxu0
        %s405 = scalar_lea.vmem %s246, 56
        %v406 = vld [vmem:[%s405] sm:$0xff]
        %v407 = vld [vmem:[%s405 + $0x8] sm:$0xff]
        %v408 = vld [vmem:[%s405 + $0x10] sm:$0xff]
        %v409 = vld [vmem:[%s405 + $0x18] sm:$0xff]
        %v410 = vld [vmem:[%s405 + $0x20] sm:$0xff]
        %v411 = vld [vmem:[%s405 + $0x28] sm:$0xff]
        %v412 = vld [vmem:[%s405 + $0x30] sm:$0x1]
        %v414 = vsel %vm269, %v406, 0
        %v417 = vsel %vm269, %v407, 0
        %v420 = vsel %vm269, %v408, 0
        %v423 = vsel %vm269, %v409, 0
        %v426 = vsel %vm269, %v410, 0
        %v429 = vsel %vm269, %v411, 0
        %v432 = vsel %vm269, %v412, 0
        %434 = vmatprep.subr.mxu0 0.0
        %435 = vmatpush1.msra.mxu0 0.0
        %436 = vmatprep.subr.mxu0 0.0
        %437 = vmatpush1.msra.mxu0 0.0
        %438 = vmatprep.subr.mxu0 0.0
        %439 = vmatpush1.msra.mxu0 0.0
        %440 = vmatprep.subr.mxu0 0.0
        %441 = vmatpush1.msra.mxu0 0.0
        %442 = vmatprep.subr.mxu0 0.0
        %443 = vmatpush1.msra.mxu0 0.0
        %444 = vmatprep.subr.mxu0 0.0
        %445 = vmatpush1.msra.mxu0 0.0
        %446 = vmatprep.subr.mxu0 0.0
        %447 = vmatpush1.msra.mxu0 0.0
        %448 = vmatprep.subr.mxu0 0.0
        %449 = vmatpush1.msra.mxu0 0.0
        %450 = vmatprep.subr.mxu0 0.0
        %451 = vmatpush1.msra.mxu0 0.0
        %452 = vmatprep.subr.mxu0 0.0
        %453 = vmatpush1.msra.mxu0 0.0
        %454 = vmatprep.subr.mxu0 0.0
        %455 = vmatpush1.msra.mxu0 0.0
        %456 = vmatprep.subr.mxu0 0.0
        %457 = vmatpush1.msra.mxu0 0.0
        %458 = vmatprep.subr.mxu0 %v296
        %459 = vmatpush1.msra.mxu0 %v293
        %460 = vmatprep.subr.mxu0 %v259
        %461 = vmatpush1.msra.mxu0 %v258
        %462 = vmatprep.subr.mxu0 %v257
        %463 = vmatpush1.msra.mxu0 %v256
        %464 = vmatprep.subr.mxu0 %v255
        %465 = vmatpush1.msra.mxu0 %v254
        %466 = vmatprep.subr.mxu0 0.0
        %467 = vmatpush2.msra.mxu0 0.0
        %468 = vmatprep.subr.mxu0 0.0
        %469 = vmatpush2.msra.mxu0 0.0
        %470 = vmatprep.subr.mxu0 0.0
        %471 = vmatpush2.msra.mxu0 0.0
        %472 = vmatprep.subr.mxu0 0.0
        %473 = vmatpush2.msra.mxu0 0.0
        %474 = vmatprep.subr.mxu0 0.0
        %475 = vmatpush2.msra.mxu0 0.0
        %476 = vmatprep.subr.mxu0 0.0
        %477 = vmatpush2.msra.mxu0 0.0
        %478 = vmatprep.subr.mxu0 0.0
        %479 = vmatpush2.msra.mxu0 0.0
        %480 = vmatprep.subr.mxu0 0.0
        %481 = vmatpush2.msra.mxu0 0.0
        %482 = vmatprep.subr.mxu0 0.0
        %483 = vmatpush2.msra.mxu0 0.0
        %484 = vmatprep.subr.mxu0 0.0
        %485 = vmatpush2.msra.mxu0 0.0
        %486 = vmatprep.subr.mxu0 0.0
        %487 = vmatpush2.msra.mxu0 0.0
        %488 = vmatprep.subr.mxu0 0.0
        %489 = vmatpush2.msra.mxu0 0.0
        %490 = vmatprep.subr.mxu0 0.0
        %491 = vmatpush2.msra.mxu0 0.0
        %492 = vmatprep.subr.mxu0 0.0
        %493 = vmatpush2.msra.mxu0 0.0
        %494 = vmatprep.subr.mxu0 0.0
        %495 = vmatpush2.msra.mxu0 0.0
        %496 = vmatprep.subr.mxu0 0.0
        %497 = vmatpush2.msra.mxu0 0.0
        %498 = vmatprep.mubr.f32.mxu0 0.0
        %499 = vmatmul.mubr.f32.gmra.mxu0 %v414
        %v500 = vpop.f32.mrf.mxu0
        %v501 = vadd.f32 0.0, %v500
        %v502 = vpop.f32.mrf.mxu0
        %v503 = vadd.f32 0.0, %v502
        %504 = vmatprep.mubr.f32.mxu0 0.0
        %505 = vmatmul.mubr.f32.gmra.mxu0 %v417
        %v506 = vpop.f32.mrf.mxu0
        %v507 = vadd.f32 0.0, %v506
        %v508 = vpop.f32.mrf.mxu0
        %v509 = vadd.f32 0.0, %v508
        %510 = vmatprep.mubr.f32.mxu0 0.0
        %511 = vmatmul.mubr.f32.gmra.mxu0 %v420
        %v512 = vpop.f32.mrf.mxu0
        %v513 = vadd.f32 0.0, %v512
        %v514 = vpop.f32.mrf.mxu0
        %v515 = vadd.f32 0.0, %v514
        %516 = vmatprep.mubr.f32.mxu0 0.0
        %517 = vmatmul.mubr.f32.gmra.mxu0 %v423
        %v518 = vpop.f32.mrf.mxu0
        %v519 = vadd.f32 0.0, %v518
        %v520 = vpop.f32.mrf.mxu0
        %v521 = vadd.f32 0.0, %v520
        %522 = vmatprep.mubr.f32.mxu0 0.0
        %523 = vmatmul.mubr.f32.gmra.mxu0 %v426
        %v524 = vpop.f32.mrf.mxu0
        %v525 = vadd.f32 0.0, %v524
        %v526 = vpop.f32.mrf.mxu0
        %v527 = vadd.f32 0.0, %v526
        %528 = vmatprep.mubr.f32.mxu0 0.0
        %529 = vmatmul.mubr.f32.gmra.mxu0 %v429
        %v530 = vpop.f32.mrf.mxu0
        %v531 = vadd.f32 0.0, %v530
        %v532 = vpop.f32.mrf.mxu0
        %v533 = vadd.f32 0.0, %v532
        %534 = vmatprep.mubr.f32.mxu0 0.0
        %535 = vmatmul.mubr.f32.gmra.mxu0 %v432
        %v536 = vpop.f32.mrf.mxu0
        %v537 = vadd.f32 0.0, %v536
        %v538 = vpop.f32.mrf.mxu0
        %v539 = vadd.f32 0.0, %v538
        %540 = vdwg.mxu0
        %s541 = scalar_lea.vmem %s246, 112
        %v542 = vld [vmem:[%s541] sm:$0xff]
        %v543 = vld [vmem:[%s541 + $0x8] sm:$0xff]
        %v544 = vld [vmem:[%s541 + $0x10] sm:$0xff]
        %v545 = vld [vmem:[%s541 + $0x18] sm:$0xff]
        %v546 = vld [vmem:[%s541 + $0x20] sm:$0xff]
        %v547 = vld [vmem:[%s541 + $0x28] sm:$0xff]
        %v548 = vld [vmem:[%s541 + $0x30] sm:$0x1]
        %v550 = vsel %vm269, %v542, 0
        %v553 = vsel %vm269, %v543, 0
        %v556 = vsel %vm269, %v544, 0
        %v559 = vsel %vm269, %v545, 0
        %v562 = vsel %vm269, %v546, 0
        %v565 = vsel %vm269, %v547, 0
        %v568 = vsel %vm269, %v548, 0
        %570 = vmatprep.subr.mxu0 0.0
        %571 = vmatpush1.msra.mxu0 0.0
        %572 = vmatprep.subr.mxu0 0.0
        %573 = vmatpush1.msra.mxu0 0.0
        %574 = vmatprep.subr.mxu0 0.0
        %575 = vmatpush1.msra.mxu0 0.0
        %576 = vmatprep.subr.mxu0 0.0
        %577 = vmatpush1.msra.mxu0 0.0
        %578 = vmatprep.subr.mxu0 0.0
        %579 = vmatpush1.msra.mxu0 0.0
        %580 = vmatprep.subr.mxu0 0.0
        %581 = vmatpush1.msra.mxu0 0.0
        %582 = vmatprep.subr.mxu0 0.0
        %583 = vmatpush1.msra.mxu0 0.0
        %584 = vmatprep.subr.mxu0 0.0
        %585 = vmatpush1.msra.mxu0 0.0
        %586 = vmatprep.subr.mxu0 0.0
        %587 = vmatpush1.msra.mxu0 0.0
        %588 = vmatprep.subr.mxu0 0.0
        %589 = vmatpush1.msra.mxu0 0.0
        %590 = vmatprep.subr.mxu0 0.0
        %591 = vmatpush1.msra.mxu0 0.0
        %592 = vmatprep.subr.mxu0 0.0
        %593 = vmatpush1.msra.mxu0 0.0
        %594 = vmatprep.subr.mxu0 %v296
        %595 = vmatpush1.msra.mxu0 %v293
        %596 = vmatprep.subr.mxu0 %v259
        %597 = vmatpush1.msra.mxu0 %v258
        %598 = vmatprep.subr.mxu0 %v257
        %599 = vmatpush1.msra.mxu0 %v256
        %600 = vmatprep.subr.mxu0 %v255
        %601 = vmatpush1.msra.mxu0 %v254
        %602 = vmatprep.subr.mxu0 0.0
        %603 = vmatpush2.msra.mxu0 0.0
        %604 = vmatprep.subr.mxu0 0.0
        %605 = vmatpush2.msra.mxu0 0.0
        %606 = vmatprep.subr.mxu0 0.0
        %607 = vmatpush2.msra.mxu0 0.0
        %608 = vmatprep.subr.mxu0 0.0
        %609 = vmatpush2.msra.mxu0 0.0
        %610 = vmatprep.subr.mxu0 0.0
        %611 = vmatpush2.msra.mxu0 0.0
        %612 = vmatprep.subr.mxu0 0.0
        %613 = vmatpush2.msra.mxu0 0.0
        %614 = vmatprep.subr.mxu0 0.0
        %615 = vmatpush2.msra.mxu0 0.0
        %616 = vmatprep.subr.mxu0 0.0
        %617 = vmatpush2.msra.mxu0 0.0
        %618 = vmatprep.subr.mxu0 0.0
        %619 = vmatpush2.msra.mxu0 0.0
        %620 = vmatprep.subr.mxu0 0.0
        %621 = vmatpush2.msra.mxu0 0.0
        %622 = vmatprep.subr.mxu0 0.0
        %623 = vmatpush2.msra.mxu0 0.0
        %624 = vmatprep.subr.mxu0 0.0
        %625 = vmatpush2.msra.mxu0 0.0
        %626 = vmatprep.subr.mxu0 0.0
        %627 = vmatpush2.msra.mxu0 0.0
        %628 = vmatprep.subr.mxu0 0.0
        %629 = vmatpush2.msra.mxu0 0.0
        %630 = vmatprep.subr.mxu0 0.0
        %631 = vmatpush2.msra.mxu0 0.0
        %632 = vmatprep.subr.mxu0 0.0
        %633 = vmatpush2.msra.mxu0 0.0
        %634 = vmatprep.mubr.f32.mxu0 0.0
        %635 = vmatmul.mubr.f32.gmra.mxu0 %v550
        %v636 = vpop.f32.mrf.mxu0
        %v637 = vadd.f32 0.0, %v636
        %v638 = vpop.f32.mrf.mxu0
        %v639 = vadd.f32 0.0, %v638
        %640 = vmatprep.mubr.f32.mxu0 0.0
        %641 = vmatmul.mubr.f32.gmra.mxu0 %v553
        %v642 = vpop.f32.mrf.mxu0
        %v643 = vadd.f32 0.0, %v642
        %v644 = vpop.f32.mrf.mxu0
        %v645 = vadd.f32 0.0, %v644
        %646 = vmatprep.mubr.f32.mxu0 0.0
        %647 = vmatmul.mubr.f32.gmra.mxu0 %v556
        %v648 = vpop.f32.mrf.mxu0
        %v649 = vadd.f32 0.0, %v648
        %v650 = vpop.f32.mrf.mxu0
        %v651 = vadd.f32 0.0, %v650
        %652 = vmatprep.mubr.f32.mxu0 0.0
        %653 = vmatmul.mubr.f32.gmra.mxu0 %v559
        %v654 = vpop.f32.mrf.mxu0
        %v655 = vadd.f32 0.0, %v654
        %v656 = vpop.f32.mrf.mxu0
        %v657 = vadd.f32 0.0, %v656
        %658 = vmatprep.mubr.f32.mxu0 0.0
        %659 = vmatmul.mubr.f32.gmra.mxu0 %v562
        %v660 = vpop.f32.mrf.mxu0
        %v661 = vadd.f32 0.0, %v660
        %v662 = vpop.f32.mrf.mxu0
        %v663 = vadd.f32 0.0, %v662
        %664 = vmatprep.mubr.f32.mxu0 0.0
        %665 = vmatmul.mubr.f32.gmra.mxu0 %v565
        %v666 = vpop.f32.mrf.mxu0
        %v667 = vadd.f32 0.0, %v666
        %v668 = vpop.f32.mrf.mxu0
        %v669 = vadd.f32 0.0, %v668
        %670 = vmatprep.mubr.f32.mxu0 0.0
        %671 = vmatmul.mubr.f32.gmra.mxu0 %v568
        %v672 = vpop.f32.mrf.mxu0
        %v673 = vadd.f32 0.0, %v672
        %v674 = vpop.f32.mrf.mxu0
        %v675 = vadd.f32 0.0, %v674
        %676 = vdwg.mxu0
        %s677 = scalar_lea.vmem %s246, 168
        %v678 = vld [vmem:[%s677] sm:$0xff]
        %v679 = vld [vmem:[%s677 + $0x8] sm:$0xff]
        %v680 = vld [vmem:[%s677 + $0x10] sm:$0xff]
        %v681 = vld [vmem:[%s677 + $0x18] sm:$0xff]
        %v682 = vld [vmem:[%s677 + $0x20] sm:$0xff]
        %v683 = vld [vmem:[%s677 + $0x28] sm:$0xff]
        %v684 = vld [vmem:[%s677 + $0x30] sm:$0x1]
        %v686 = vsel %vm269, %v678, 0
        %v689 = vsel %vm269, %v679, 0
        %v692 = vsel %vm269, %v680, 0
        %v695 = vsel %vm269, %v681, 0
        %v698 = vsel %vm269, %v682, 0
        %v701 = vsel %vm269, %v683, 0
        %v704 = vsel %vm269, %v684, 0
        %706 = vmatprep.subr.mxu0 0.0
        %707 = vmatpush1.msra.mxu0 0.0
        %708 = vmatprep.subr.mxu0 0.0
        %709 = vmatpush1.msra.mxu0 0.0
        %710 = vmatprep.subr.mxu0 0.0
        %711 = vmatpush1.msra.mxu0 0.0
        %712 = vmatprep.subr.mxu0 0.0
        %713 = vmatpush1.msra.mxu0 0.0
        %714 = vmatprep.subr.mxu0 0.0
        %715 = vmatpush1.msra.mxu0 0.0
        %716 = vmatprep.subr.mxu0 0.0
        %717 = vmatpush1.msra.mxu0 0.0
        %718 = vmatprep.subr.mxu0 0.0
        %719 = vmatpush1.msra.mxu0 0.0
        %720 = vmatprep.subr.mxu0 0.0
        %721 = vmatpush1.msra.mxu0 0.0
        %722 = vmatprep.subr.mxu0 0.0
        %723 = vmatpush1.msra.mxu0 0.0
        %724 = vmatprep.subr.mxu0 0.0
        %725 = vmatpush1.msra.mxu0 0.0
        %726 = vmatprep.subr.mxu0 0.0
        %727 = vmatpush1.msra.mxu0 0.0
        %728 = vmatprep.subr.mxu0 0.0
        %729 = vmatpush1.msra.mxu0 0.0
        %730 = vmatprep.subr.mxu0 %v296
        %731 = vmatpush1.msra.mxu0 %v293
        %732 = vmatprep.subr.mxu0 %v259
        %733 = vmatpush1.msra.mxu0 %v258
        %734 = vmatprep.subr.mxu0 %v257
        %735 = vmatpush1.msra.mxu0 %v256
        %736 = vmatprep.subr.mxu0 %v255
        %737 = vmatpush1.msra.mxu0 %v254
        %738 = vmatprep.subr.mxu0 0.0
        %739 = vmatpush2.msra.mxu0 0.0
        %740 = vmatprep.subr.mxu0 0.0
        %741 = vmatpush2.msra.mxu0 0.0
        %742 = vmatprep.subr.mxu0 0.0
        %743 = vmatpush2.msra.mxu0 0.0
        %744 = vmatprep.subr.mxu0 0.0
        %745 = vmatpush2.msra.mxu0 0.0
        %746 = vmatprep.subr.mxu0 0.0
        %747 = vmatpush2.msra.mxu0 0.0
        %748 = vmatprep.subr.mxu0 0.0
        %749 = vmatpush2.msra.mxu0 0.0
        %750 = vmatprep.subr.mxu0 0.0
        %751 = vmatpush2.msra.mxu0 0.0
        %752 = vmatprep.subr.mxu0 0.0
        %753 = vmatpush2.msra.mxu0 0.0
        %754 = vmatprep.subr.mxu0 0.0
        %755 = vmatpush2.msra.mxu0 0.0
        %756 = vmatprep.subr.mxu0 0.0
        %757 = vmatpush2.msra.mxu0 0.0
        %758 = vmatprep.subr.mxu0 0.0
        %759 = vmatpush2.msra.mxu0 0.0
        %760 = vmatprep.subr.mxu0 0.0
        %761 = vmatpush2.msra.mxu0 0.0
        %762 = vmatprep.subr.mxu0 0.0
        %763 = vmatpush2.msra.mxu0 0.0
        %764 = vmatprep.subr.mxu0 0.0
        %765 = vmatpush2.msra.mxu0 0.0
        %766 = vmatprep.subr.mxu0 0.0
        %767 = vmatpush2.msra.mxu0 0.0
        %768 = vmatprep.subr.mxu0 0.0
        %769 = vmatpush2.msra.mxu0 0.0
        %770 = vmatprep.mubr.f32.mxu0 0.0
        %771 = vmatmul.mubr.f32.gmra.mxu0 %v686
        %v772 = vpop.f32.mrf.mxu0
        %v773 = vadd.f32 0.0, %v772
        %v774 = vpop.f32.mrf.mxu0
        %v775 = vadd.f32 0.0, %v774
        %776 = vmatprep.mubr.f32.mxu0 0.0
        %777 = vmatmul.mubr.f32.gmra.mxu0 %v689
        %v778 = vpop.f32.mrf.mxu0
        %v779 = vadd.f32 0.0, %v778
        %v780 = vpop.f32.mrf.mxu0
        %v781 = vadd.f32 0.0, %v780
        %782 = vmatprep.mubr.f32.mxu0 0.0
        %783 = vmatmul.mubr.f32.gmra.mxu0 %v692
        %v784 = vpop.f32.mrf.mxu0
        %v785 = vadd.f32 0.0, %v784
        %v786 = vpop.f32.mrf.mxu0
        %v787 = vadd.f32 0.0, %v786
        %788 = vmatprep.mubr.f32.mxu0 0.0
        %789 = vmatmul.mubr.f32.gmra.mxu0 %v695
        %v790 = vpop.f32.mrf.mxu0
        %v791 = vadd.f32 0.0, %v790
        %v792 = vpop.f32.mrf.mxu0
        %v793 = vadd.f32 0.0, %v792
        %794 = vmatprep.mubr.f32.mxu0 0.0
        %795 = vmatmul.mubr.f32.gmra.mxu0 %v698
        %v796 = vpop.f32.mrf.mxu0
        %v797 = vadd.f32 0.0, %v796
        %v798 = vpop.f32.mrf.mxu0
        %v799 = vadd.f32 0.0, %v798
        %800 = vmatprep.mubr.f32.mxu0 0.0
        %801 = vmatmul.mubr.f32.gmra.mxu0 %v701
        %v802 = vpop.f32.mrf.mxu0
        %v803 = vadd.f32 0.0, %v802
        %v804 = vpop.f32.mrf.mxu0
        %v805 = vadd.f32 0.0, %v804
        %806 = vmatprep.mubr.f32.mxu0 0.0
        %807 = vmatmul.mubr.f32.gmra.mxu0 %v704
        %v808 = vpop.f32.mrf.mxu0
        %v809 = vadd.f32 0.0, %v808
        %v810 = vpop.f32.mrf.mxu0
        %v811 = vadd.f32 0.0, %v810
        %812 = vdwg.mxu0
        %v813 = vmax.f32 %v365, %v501
        %v814 = vmax.f32 %v367, %v503
        %v815 = vmax.f32 %v371, %v507
        %v816 = vmax.f32 %v373, %v509
        %v817 = vmax.f32 %v377, %v513
        %v818 = vmax.f32 %v379, %v515
        %v819 = vmax.f32 %v383, %v519
        %v820 = vmax.f32 %v385, %v521
        %v821 = vmax.f32 %v389, %v525
        %v822 = vmax.f32 %v391, %v527
        %v823 = vmax.f32 %v395, %v531
        %v824 = vmax.f32 %v397, %v533
        %v825 = vmax.f32 %v401, %v537
        %v826 = vmax.f32 %v403, %v539
        %v827 = vmax.f32 %v637, %v773
        %v828 = vmax.f32 %v639, %v775
        %v829 = vmax.f32 %v643, %v779
        %v830 = vmax.f32 %v645, %v781
        %v831 = vmax.f32 %v649, %v785
        %v832 = vmax.f32 %v651, %v787
        %v833 = vmax.f32 %v655, %v791
        %v834 = vmax.f32 %v657, %v793
        %v835 = vmax.f32 %v661, %v797
        %v836 = vmax.f32 %v663, %v799
        %v837 = vmax.f32 %v667, %v803
        %v838 = vmax.f32 %v669, %v805
        %v839 = vmax.f32 %v673, %v809
        %v840 = vmax.f32 %v675, %v811
        %v841 = vmax.f32 %v813, %v827
        %v842 = vmax.f32 %v814, %v828
        %v843 = vmax.f32 %v815, %v829
        %v844 = vmax.f32 %v816, %v830
        %v845 = vmax.f32 %v817, %v831
        %v846 = vmax.f32 %v818, %v832
        %v847 = vmax.f32 %v819, %v833
        %v848 = vmax.f32 %v820, %v834
        %v849 = vmax.f32 %v821, %v835
        %v850 = vmax.f32 %v822, %v836
        %v851 = vmax.f32 %v823, %v837
        %v852 = vmax.f32 %v824, %v838
        %v853 = vmax.f32 %v825, %v839
        %v854 = vmax.f32 %v826, %v840
        %v855 = vld [vmem:[%s251] sm:$0x3]
        %v857 = vlaneseq
        %v858 = vshrl.u32 %v857, 7
        %v859 = vsub.s32 0, %v858
        %v860 = vrot.slane %v855, %v859
        %v861 = vlaneseq
        %v862 = vshrl.u32 %v861, 7
        %v863 = vsub.s32 1, %v862
        %v864 = vrot.slane %v855, %v863
        %v867 = vadd.f32 %v841, %v860
        %v868 = vadd.f32 %v842, %v864
        %v869 = vadd.f32 %v843, %v860
        %v870 = vadd.f32 %v844, %v864
        %v871 = vadd.f32 %v845, %v860
        %v872 = vadd.f32 %v846, %v864
        %v873 = vadd.f32 %v847, %v860
        %v874 = vadd.f32 %v848, %v864
        %v875 = vadd.f32 %v849, %v860
        %v876 = vadd.f32 %v850, %v864
        %v877 = vadd.f32 %v851, %v860
        %v878 = vadd.f32 %v852, %v864
        %v879 = vadd.f32 %v853, %v860
        %v880 = vadd.f32 %v854, %v864
        %v881 = vmax.f32 %v867, 0.0
        %v882 = vmax.f32 %v868, 0.0
        %v883 = vmax.f32 %v869, 0.0
        %v884 = vmax.f32 %v870, 0.0
        %v885 = vmax.f32 %v871, 0.0
        %v886 = vmax.f32 %v872, 0.0
        %v887 = vmax.f32 %v873, 0.0
        %v888 = vmax.f32 %v874, 0.0
        %v889 = vmax.f32 %v875, 0.0
        %v890 = vmax.f32 %v876, 0.0
        %v891 = vmax.f32 %v877, 0.0
        %v892 = vmax.f32 %v878, 0.0
        %v893 = vmax.f32 %v879, 0.0
        %v894 = vmax.f32 %v880, 0.0
        %v895 = vpack.c.bf16 %v883, %v881
        %v896 = vpack.c.bf16 %v884, %v882
        %v897 = vpack.c.bf16 %v887, %v885
        %v898 = vpack.c.bf16 %v888, %v886
        %v899 = vpack.c.bf16 %v891, %v889
        %v900 = vpack.c.bf16 %v892, %v890
        %v901 = vpack.c.bf16 %v893, %v893
        %v902 = vpack.c.bf16 %v894, %v894
        %v911 = vunpack.c.l.b16 %v895
        %v912 = vunpack.c.l.b16 %v896
        %v913 = vunpack.c.h.b16 %v895
        %v914 = vunpack.c.h.b16 %v896
        %v915 = vunpack.c.l.b16 %v897
        %v916 = vunpack.c.l.b16 %v898
        %v917 = vunpack.c.h.b16 %v897
        %v918 = vunpack.c.h.b16 %v898
        %v919 = vunpack.c.l.b16 %v899
        %v920 = vunpack.c.l.b16 %v900
        %v921 = vunpack.c.h.b16 %v899
        %v922 = vunpack.c.h.b16 %v900
        %v923 = vunpack.c.l.b16 %v901
        %v924 = vunpack.c.l.b16 %v902
        %v925 = vpack.c.b16 %v912, %v911
        %v926 = vpack.c.b16 %v914, %v913
        %v927 = vpack.c.b16 %v916, %v915
        %v928 = vpack.c.b16 %v918, %v917
        %v929 = vpack.c.b16 %v920, %v919
        %v930 = vpack.c.b16 %v922, %v921
        %v931 = vpack.c.b16 %v924, %v923
        %939 = vst [vmem:[%s241] sm:$0xff] %v925
        %940 = vst [vmem:[%s241 + $0x8] sm:$0xff] %v926
        %941 = vst [vmem:[%s241 + $0x10] sm:$0xff] %v927
        %942 = vst [vmem:[%s241 + $0x18] sm:$0xff] %v928
        %943 = vst [vmem:[%s241 + $0x20] sm:$0xff] %v929
        %944 = vst [vmem:[%s241 + $0x28] sm:$0xff] %v930
        %vm945 = vcmask 1040384
        %vm946 = vsmask.f32 256
        %vm947 = vmand %vm945, %vm946
        %vm948 = vcmask 1044484
        %vm949 = vsmask.f32 4352
        %vm950 = vmand %vm948, %vm949
        %vm951 = vmor %vm950, %vm947
        %v952 = vld [vmem:[%s241 + $0x30] sm:$0x11]
        %v953 = vsel %vm951, %v931, %v952
        %954 = vst [vmem:[%s241 + $0x30] sm:$0x11] %v953
        %s955 = sand.u32 %s114, 1
        %s956 = sand.u32 %s114, 1
        %s957 = smul.addr %s956, 56
        %s958 = scalar_lea.vmem [#allocation3], %s957
        // Predicated region
        $region56: #{tpu_custom_call.1} parent=50 // pred_check
          %p959 = pneg %p124
        $region57: #{tpu_custom_call.1} parent=50 // pred_check_branch
          %961 = sbr.rel (%p959) target = $region59
        $region58: #{tpu_custom_call.1} parent=50 // pred_region
          %s962 = smul.u32 2, %s19
          %s963 = smul.addr %s18, 28
          %s964 = sadd.s32 %s962, %s963
          %s965 = smul.addr %s964, 4
          %s966 = scalar_lea.vmem %s3, %s965
          // Predicated region
          $region60: #{tpu_custom_call.1} parent=58 // pred_check
            _
          $region61: #{tpu_custom_call.1} parent=58 // pred_check_branch
            %968 = sbr.rel (0) target = $region63
          $region62: #{tpu_custom_call.1} parent=58 // pred_region
            // Predicated region
            $region64: #{tpu_custom_call.1} parent=62 // pred_check
              _
            $region65: #{tpu_custom_call.1} parent=62 // pred_check_branch
              %970 = sbr.rel (0) target = $region67
            $region66: #{tpu_custom_call.1} parent=62 // pred_region
              // Predicated region
              $region79: #{tpu_custom_call.1} parent=66 // pred_check
                _
              $region80: #{tpu_custom_call.1} parent=66 // pred_check_branch
                %998 = sbr.rel (0) target = $region82
              $region81: #{tpu_custom_call.1} parent=66 // pred_region
                loop: start=0, step=1, limit=1
                $region83: #{tpu_custom_call.1} parent=81 // loop_pre_header
                  _
                $region84: #{tpu_custom_call.1} parent=81 // loop_header
                  %s1000 = sphi 0, %s1004
                  %p1001 = scmp.ge.s32.totalorder %s1000, 1
                  %s1005 = sphi %s958, %s958
                  %s1006 = sphi %s966, %s966
                $region85: #{tpu_custom_call.1} parent=81 // loop_header_branch
                  %1003 = sbr.rel (%p1001) target = $region89
                $region86: #{tpu_custom_call.1} parent=81 // loop_body
                  %v1007 = vld [vmem:[%s1005] sm:$0xff]
                  %1008 = vst [vmem:[%s1006] sm:$0xff] %v1007
                  %v1009 = vld [vmem:[%s1005 + $0x8] sm:$0xff]
                  %1010 = vst [vmem:[%s1006 + $0x10] sm:$0xff] %v1009
                  %v1011 = vld [vmem:[%s1005 + $0x10] sm:$0xff]
                  %1012 = vst [vmem:[%s1006 + $0x20] sm:$0xff] %v1011
                  %v1013 = vld [vmem:[%s1005 + $0x18] sm:$0xff]
                  %1014 = vst [vmem:[%s1006 + $0x30] sm:$0xff] %v1013
                  %v1015 = vld [vmem:[%s1005 + $0x20] sm:$0xff]
                  %1016 = vst [vmem:[%s1006 + $0x40] sm:$0xff] %v1015
                  %v1017 = vld [vmem:[%s1005 + $0x28] sm:$0xff]
                  %1018 = vst [vmem:[%s1006 + $0x50] sm:$0xff] %v1017
                  %v1019 = vld [vmem:[%s1005 + $0x30] sm:$0xff]
                  %1020 = vst [vmem:[%s1006 + $0x60] sm:$0xff] %v1019
                $region87: #{tpu_custom_call.1} parent=81 // loop_footer
                  %s1004 = sadd.s32 1, %s1000
                $region88: #{tpu_custom_call.1} parent=81 // loop_footer_branch
                  %999 = sbr.rel target = $region84
                $region89: #{tpu_custom_call.1} parent=81 // loop_exit
                  _
              $region82: #{tpu_custom_call.1} parent=66 // pred_fallthru
                _
              // Predicated region
              $region90: #{tpu_custom_call.1} parent=66 // pred_check
                _
              $region91: #{tpu_custom_call.1} parent=66 // pred_check_branch
                %1022 = sbr.rel target = $region93
              $region92: #{tpu_custom_call.1} parent=66 // pred_region
                _
              $region93: #{tpu_custom_call.1} parent=66 // pred_fallthru
                _
            $region67: #{tpu_custom_call.1} parent=62 // pred_fallthru
              _
            // Predicated region
            $region68: #{tpu_custom_call.1} parent=62 // pred_check
              _
            $region69: #{tpu_custom_call.1} parent=62 // pred_check_branch
              %972 = sbr.rel target = $region71
            $region70: #{tpu_custom_call.1} parent=62 // pred_region
              %s974 = ssub.s32 256, 1
              loop: start=0, step=1, limit=1
              $region72: #{tpu_custom_call.1} parent=70 // loop_pre_header
                _
              $region73: #{tpu_custom_call.1} parent=70 // loop_header
                %s976 = sphi 0, %s980
                %p977 = scmp.ge.s32.totalorder %s976, 1
                %s981 = sphi %s958, %s958
                %s982 = sphi %s966, %s966
              $region74: #{tpu_custom_call.1} parent=70 // loop_header_branch
                %979 = sbr.rel (%p977) target = $region78
              $region75: #{tpu_custom_call.1} parent=70 // loop_body
                %v983 = vld [vmem:[%s981] sm:%s974]
                %984 = vst [vmem:[%s982] sm:%s974] %v983
                %v985 = vld [vmem:[%s981 + $0x8] sm:%s974]
                %986 = vst [vmem:[%s982 + $0x10] sm:%s974] %v985
                %v987 = vld [vmem:[%s981 + $0x10] sm:%s974]
                %988 = vst [vmem:[%s982 + $0x20] sm:%s974] %v987
                %v989 = vld [vmem:[%s981 + $0x18] sm:%s974]
                %990 = vst [vmem:[%s982 + $0x30] sm:%s974] %v989
                %v991 = vld [vmem:[%s981 + $0x20] sm:%s974]
                %992 = vst [vmem:[%s982 + $0x40] sm:%s974] %v991
                %v993 = vld [vmem:[%s981 + $0x28] sm:%s974]
                %994 = vst [vmem:[%s982 + $0x50] sm:%s974] %v993
                %v995 = vld [vmem:[%s981 + $0x30] sm:%s974]
                %996 = vst [vmem:[%s982 + $0x60] sm:%s974] %v995
              $region76: #{tpu_custom_call.1} parent=70 // loop_footer
                %s980 = sadd.s32 1, %s976
              $region77: #{tpu_custom_call.1} parent=70 // loop_footer_branch
                %975 = sbr.rel target = $region73
              $region78: #{tpu_custom_call.1} parent=70 // loop_exit
                _
            $region71: #{tpu_custom_call.1} parent=62 // pred_fallthru
              _
          $region63: #{tpu_custom_call.1} parent=58 // pred_fallthru
            _
          %1023 = vnop
        $region59: #{tpu_custom_call.1} parent=50 // pred_fallthru
          _
      $region51: #{tpu_custom_call.1} parent=5 // pred_fallthru
        _
      %p1024 = scmp.le.s32.totalorder 2, %s9
      // Predicated region
      $region94: #{tpu_custom_call.1} parent=5 // pred_check
        %p1025 = pneg %p1024
      $region95: #{tpu_custom_call.1} parent=5 // pred_check_branch
        %1027 = sbr.rel (%p1025) target = $region97
      $region96: #{tpu_custom_call.1} parent=5 // pred_region
        %s1028 = ssub.s32 %s9, 2
        // Predicated region
        $region98: #{tpu_custom_call.1} parent=96 // pred_check
          %p1029 = pneg %p130
        $region99: #{tpu_custom_call.1} parent=96 // pred_check_branch
          %1031 = sbr.rel (%p1029) target = $region101
        $region100: #{tpu_custom_call.1} parent=96 // pred_region
          %s1032 = sand.u32 %s115, 1
          %s1033 = sand.u32 %s115, 1
          %s1034 = smul.addr %s1033, 56
          %s1035 = scalar_lea.vmem [#allocation3], %s1034
        $region101: #{tpu_custom_call.1} parent=96 // pred_fallthru
          _
      $region97: #{tpu_custom_call.1} parent=5 // pred_fallthru
        _
    $region6: #{tpu_custom_call.1} parent=1 // loop_footer
      %s13 = sadd.s32 1, %s9
    $region7: #{tpu_custom_call.1} parent=1 // loop_footer_branch
      %8 = sbr.rel target = $region3
    $region8: #{tpu_custom_call.1} parent=1 // loop_exit
      _

</llo_original>
